<compile_context>
chip_gen: v7x
topology: tpu7x:2x2x1
jax: 0.10.0
libtpu: 0.0.40
codegen_flags: <defaults>
</compile_context>

<pallas_src>
import functools

import jax
import jax.numpy as jnp
from jax.experimental import pallas as pl
from jax.experimental.pallas import tpu as pltpu

EPS = 1e-5        # PyTorch BatchNorm1d default eps
LANE = 128        # lane width
SUBLANE = 8       # f32 sublane count
OUT_PAD = 128     # lane-dense padded width of the 1-wide output


def _round_up(n, m):
    return ((n + m - 1) // m) * m


# ----------------------------------------------------------------------------
# Kernel: per batch tile, run the whole (BN-folded) MLP.
#   x_ref  : (tb, Din_p)        compute dtype
#   w0_ref : (Din_p, H_p)       compute dtype   [in, out]
#   b0_ref : (1, H_p)           f32
#   wh_ref : (L, H_p, H_p)      compute dtype   [layer, in, out]  (BN folded in)
#   bh_ref : (L, 1, H_p)        f32             (BN folded in)
#   wf_ref : (H_p, OUT_PAD)     compute dtype   (BN folded in; only col 0 nonzero)
#   bf_ref : (1, OUT_PAD)       f32
#   out_ref: (tb, OUT_PAD)      f32             (only col 0 meaningful)
# ----------------------------------------------------------------------------
def mlp_kernel(x_ref, w0_ref, b0_ref, wh_ref, bh_ref, wf_ref, bf_ref, out_ref):
    dt = w0_ref.dtype

    # input layer: Linear + ReLU (its BN is folded into hidden layer 0)
    h = jnp.dot(x_ref[...], w0_ref[...], preferred_element_type=jnp.float32)
    h = jnp.maximum(h + b0_ref[...], 0.0)

    # hidden stack, fully unrolled (layer_count is static & small)
    num_hidden = wh_ref.shape[0]
    for l in range(num_hidden):
        z = jnp.dot(h.astype(dt), wh_ref[l], preferred_element_type=jnp.float32)
        h = jnp.maximum(z + bh_ref[l], 0.0)

    # output layer (lane-dense padded to OUT_PAD columns)
    out = jnp.dot(h.astype(dt), wf_ref[...], preferred_element_type=jnp.float32)
    out_ref[...] = out + bf_ref[...]


# ----------------------------------------------------------------------------
# Wrapper-side parameter prep: fold eval-mode BN into the next Linear,
# transpose to [in, out], zero-pad to lane/sublane multiples, cast weights.
# ----------------------------------------------------------------------------
def prepare_params(params, compute_dtype):
    (w0, b0, g0, be0, m0, v0, wh, bh, gh, beh, mh, vh, wf, bf) = params
    H, Din = w0.shape
    L = wh.shape[0]
    assert L >= 1, "layer_count >= 1 required by this implementation"

    Din_p = _round_up(Din, LANE)
    H_p = _round_up(H, LANE)

    # BN(h) = h * scale + shift  (eval mode, applied after ReLU)
    s0 = g0 / jnp.sqrt(v0 + EPS)          # (1, H)
    t0 = be0 - m0 * s0
    sh = gh / jnp.sqrt(vh + EPS)          # (L, 1, H)
    th = beh - mh * sh

    scales = [s0] + [sh[i] for i in range(L)]   # L+1 entries of (1, H)
    shifts = [t0] + [th[i] for i in range(L)]

    # Layer 0: plain transpose + pad (its BN folds forward into hidden layer 0).
    w0_p = jnp.zeros((Din_p, H_p), jnp.float32).at[:Din, :H].set(w0.T)
    b0_p = jnp.zeros((1, H_p), jnp.float32).at[:, :H].set(b0)

    # Hidden layer i consumes BN i:  y = (h*sc + tt) @ W^T + b
    #                                  = h @ (W*sc)^T + (tt @ W^T + b)
    wh_list, bh_list = [], []
    for i in range(L):
        Wi = wh[i]                         # (H_out, H_in) PyTorch layout
        sc = scales[i]                     # (1, H_in)
        tt = shifts[i]                     # (1, H_in)
        W_fold = (Wi * sc).T               # (H_in, H_out), per-input-channel scale
        b_fold = bh[i] + tt @ Wi.T         # (1, H_out)
        wh_list.append(jnp.zeros((H_p, H_p), jnp.float32).at[:H, :H].set(W_fold))
        bh_list.append(jnp.zeros((1, H_p), jnp.float32).at[:, :H].set(b_fold))
    wh_p = jnp.stack(wh_list, axis=0)      # (L, H_p, H_p)
    bh_p = jnp.stack(bh_list, axis=0)      # (L, 1, H_p)

    # Final Linear(H -> 1) consumes the last BN; pad N to OUT_PAD lanes.
    sc = scales[L]
    tt = shifts[L]
    Wf_fold = (wf * sc).T                  # (H, 1)
    bf_fold = bf + tt @ wf.T               # (1, 1)
    wf_p = jnp.zeros((H_p, OUT_PAD), jnp.float32).at[:H, :1].set(Wf_fold)
    bf_p = jnp.zeros((1, OUT_PAD), jnp.float32).at[:, :1].set(bf_fold)

    return (w0_p.astype(compute_dtype), b0_p,
            wh_p.astype(compute_dtype), bh_p,
            wf_p.astype(compute_dtype), bf_p,
            Din_p, H_p)


@functools.partial(jax.jit, static_argnames=("compute_dtype", "batch_tile"))
def mlp_forward(x, params, *, compute_dtype=jnp.float32, batch_tile=128):
    batch, din = x.shape
    (w0_p, b0_p, wh_p, bh_p, wf_p, bf_p, Din_p, H_p) = prepare_params(params, compute_dtype)
    L = wh_p.shape[0]

    tb = min(batch_tile, _round_up(batch, SUBLANE))
    B_p = _round_up(batch, tb)
    x_p = jnp.zeros((B_p, Din_p), compute_dtype).at[:batch, :din].set(
        x.astype(compute_dtype))

    grid = (B_p // tb,)

    # VMEM budget: resident weights + double-buffered activation tiles + slack,
    # never below the default scoped limit, capped at 64 MiB (safe on v7x too).
    def nbytes(a):
        return a.size * a.dtype.itemsize
    weight_bytes = sum(nbytes(a) for a in (w0_p, b0_p, wh_p, bh_p, wf_p, bf_p))
    act_bytes = tb * Din_p * x_p.dtype.itemsize + tb * OUT_PAD * 4
    vmem_limit = int(min(64 * 1024 * 1024,
                         max(32 * 1024 * 1024,
                             2 * (weight_bytes + 2 * act_bytes) + (4 << 20))))

    out_p = pl.pallas_call(
        mlp_kernel,
        out_shape=jax.ShapeDtypeStruct((B_p, OUT_PAD), jnp.float32),
        grid=grid,
        in_specs=[
            pl.BlockSpec((tb, Din_p), lambda i: (i, 0)),          # x (tiled over batch)
            pl.BlockSpec((Din_p, H_p), lambda i: (0, 0)),         # w0 (resident)
            pl.BlockSpec((1, H_p), lambda i: (0, 0)),             # b0
            pl.BlockSpec((L, H_p, H_p), lambda i: (0, 0, 0)),     # wh stack (resident)
            pl.BlockSpec((L, 1, H_p), lambda i: (0, 0, 0)),       # bh stack
            pl.BlockSpec((H_p, OUT_PAD), lambda i: (0, 0)),       # wf
            pl.BlockSpec((1, OUT_PAD), lambda i: (0, 0)),         # bf
        ],
        out_specs=pl.BlockSpec((tb, OUT_PAD), lambda i: (i, 0)),
        compiler_params=pltpu.CompilerParams(
            dimension_semantics=("parallel",),
            vmem_limit_bytes=vmem_limit),
    )(x_p, w0_p, b0_p, wh_p, bh_p, wf_p, bf_p)

    return out_p[:batch, :1]


# ----------------------------------------------------------------------------
# PyTorch-style raw parameters (Linear [out,in] layout, BN in eval mode) and a
# pure-JAX reference of the original module's forward pass for validation.
# ----------------------------------------------------------------------------
def init_params(key, input_dim, hidden_dim, layer_count):
    ks = jax.random.split(key, 16)
    f32 = jnp.float32

    w0 = jax.random.normal(ks[0], (hidden_dim, input_dim), f32) / jnp.sqrt(input_dim)
    b0 = 0.01 * jax.random.normal(ks[1], (1, hidden_dim), f32)
    g0 = 1.0 + 0.1 * jax.random.normal(ks[2], (1, hidden_dim), f32)
    be0 = 0.05 * jax.random.normal(ks[3], (1, hidden_dim), f32)
    m0 = 0.1 * jax.random.normal(ks[4], (1, hidden_dim), f32)
    v0 = 0.5 + jax.random.uniform(ks[5], (1, hidden_dim), f32)

    wh = jax.random.normal(ks[6], (layer_count, hidden_dim, hidden_dim), f32) / jnp.sqrt(hidden_dim)
    bh = 0.01 * jax.random.normal(ks[7], (layer_count, 1, hidden_dim), f32)
    gh = 1.0 + 0.1 * jax.random.normal(ks[8], (layer_count, 1, hidden_dim), f32)
    beh = 0.05 * jax.random.normal(ks[9], (layer_count, 1, hidden_dim), f32)
    mh = 0.1 * jax.random.normal(ks[10], (layer_count, 1, hidden_dim), f32)
    vh = 0.5 + jax.random.uniform(ks[11], (layer_count, 1, hidden_dim), f32)

    wf = jax.random.normal(ks[12], (1, hidden_dim), f32) / jnp.sqrt(hidden_dim)
    bf = 0.01 * jax.random.normal(ks[13], (1, 1), f32)

    return (w0, b0, g0, be0, m0, v0, wh, bh, gh, beh, mh, vh, wf, bf)


def mlp_reference(x, params):
    """Pure-JAX forward of the original module (eval-mode BN), high precision."""
    (w0, b0, g0, be0, m0, v0, wh, bh, gh, beh, mh, vh, wf, bf) = params
    hi = jax.lax.Precision.HIGHEST
    h = jnp.maximum(jnp.dot(x, w0.T, precision=hi) + b0, 0.0)
    h = (h - m0) / jnp.sqrt(v0 + EPS) * g0 + be0
    for l in range(wh.shape[0]):
        h = jnp.maximum(jnp.dot(h, wh[l].T, precision=hi) + bh[l], 0.0)
        h = (h - mh[l]) / jnp.sqrt(vh[l] + EPS) * gh[l] + beh[l]
    return jnp.dot(h, wf.T, precision=hi) + bf


if __name__ == "__main__":
    batch, input_dim, hidden_dim, layer_count = 8, 16, 32, 3

    key = jax.random.PRNGKey(0)
    k_x, k_p = jax.random.split(key)
    x = jax.random.normal(k_x, (batch, input_dim), jnp.float32)
    params = init_params(k_p, input_dim, hidden_dim, layer_count)

    ref = mlp_reference(x, params)
    ref_scale = float(jnp.max(jnp.abs(ref))) + 1.0

    # float32 path: must match the reference closely (BN folding reassociates fp).
    out_f32 = jax.block_until_ready(mlp_forward(x, params, compute_dtype=jnp.float32))
    assert out_f32.shape == (batch, 1)
    err_f32 = float(jnp.max(jnp.abs(out_f32 - ref)))
    assert err_f32 < 5e-3 * ref_scale, (err_f32, ref_scale)

    # bfloat16 weights/activations (f32 accumulation + f32 epilogue): loose check.
    out_bf16 = jax.block_until_ready(mlp_forward(x, params, compute_dtype=jnp.bfloat16))
    assert out_bf16.shape == (batch, 1)
    err_bf16 = float(jnp.max(jnp.abs(out_bf16 - ref)))
    assert err_bf16 < 1e-1 * ref_scale, (err_bf16, ref_scale)

    print("KERNEL_OK")
</pallas_src>

<mosaic_0001>
module attributes {stable_mosaic.version = 11 : i64} {
  func.func @mlp_kernel(%arg0: i32, %arg1: memref<8x128xf32, #tpu.memory_space<vmem>>, %arg2: memref<128x128xf32, #tpu.memory_space<vmem>>, %arg3: memref<1x128xf32, #tpu.memory_space<vmem>>, %arg4: memref<3x128x128xf32, #tpu.memory_space<vmem>>, %arg5: memref<3x1x128xf32, #tpu.memory_space<vmem>>, %arg6: memref<128x128xf32, #tpu.memory_space<vmem>>, %arg7: memref<1x128xf32, #tpu.memory_space<vmem>>, %arg8: memref<8x128xf32, #tpu.memory_space<vmem>>) attributes {dimension_semantics = [#tpu.dimension_semantics<parallel>], iteration_bounds = array<i64: 1>, scalar_prefetch = 0 : i64, scratch_operands = 0 : i64, tpu.core_type = #tpu.core_type<tc>, window_params = [{transform_indices = @transform_0, window_bounds = array<i64: 8, 128>}, {pipeline_mode = #tpu.pipeline_mode<synchronous>, transform_indices = @transform_1, window_bounds = array<i64: 128, 128>}, {pipeline_mode = #tpu.pipeline_mode<synchronous>, transform_indices = @transform_2, window_bounds = array<i64: 1, 128>}, {pipeline_mode = #tpu.pipeline_mode<synchronous>, transform_indices = @transform_3, window_bounds = array<i64: 3, 128, 128>}, {pipeline_mode = #tpu.pipeline_mode<synchronous>, transform_indices = @transform_4, window_bounds = array<i64: 3, 1, 128>}, {pipeline_mode = #tpu.pipeline_mode<synchronous>, transform_indices = @transform_5, window_bounds = array<i64: 128, 128>}, {pipeline_mode = #tpu.pipeline_mode<synchronous>, transform_indices = @transform_6, window_bounds = array<i64: 1, 128>}, {transform_indices = @transform_7, window_bounds = array<i64: 8, 128>}]} {
    %c0 = arith.constant 0 : index
    %c0_0 = arith.constant 0 : index
    %0 = vector.load %arg1[%c0, %c0_0] : memref<8x128xf32, #tpu.memory_space<vmem>>, vector<8x128xf32>
    %c0_1 = arith.constant 0 : index
    %c0_2 = arith.constant 0 : index
    %1 = vector.load %arg2[%c0_1, %c0_2] : memref<128x128xf32, #tpu.memory_space<vmem>>, vector<128x128xf32>
    %cst = arith.constant dense<0.000000e+00> : vector<8x128xf32>
    %2 = tpu.matmul %0, %1, %cst {dimension_numbers = #tpu.dot_dimension_numbers<[1], [0], [0], [1], [0, 0, 1, 1], [], []>} : vector<8x128xf32>, vector<128x128xf32>, vector<8x128xf32> -> vector<8x128xf32>
    %c0_3 = arith.constant 0 : index
    %c0_4 = arith.constant 0 : index
    %3 = vector.load %arg3[%c0_3, %c0_4] : memref<1x128xf32, #tpu.memory_space<vmem>>, vector<1x128xf32>
    %4 = vector.broadcast %3 : vector<1x128xf32> to vector<8x128xf32>
    %5 = arith.addf %2, %4 : vector<8x128xf32>
    %cst_5 = arith.constant 0.000000e+00 : f32
    %6 = vector.broadcast %cst_5 : f32 to vector<8x128xf32>
    %7 = arith.maximumf %5, %6 : vector<8x128xf32>
    %c0_6 = arith.constant 0 : index
    %c0_7 = arith.constant 0 : index
    %c0_8 = arith.constant 0 : index
    %8 = vector.load %arg4[%c0_6, %c0_7, %c0_8] : memref<3x128x128xf32, #tpu.memory_space<vmem>>, vector<1x128x128xf32>
    %9 = vector.shape_cast %8 : vector<1x128x128xf32> to vector<128x128xf32>
    %cst_9 = arith.constant dense<0.000000e+00> : vector<8x128xf32>
    %10 = tpu.matmul %7, %9, %cst_9 {dimension_numbers = #tpu.dot_dimension_numbers<[1], [0], [0], [1], [0, 0, 1, 1], [], []>} : vector<8x128xf32>, vector<128x128xf32>, vector<8x128xf32> -> vector<8x128xf32>
    %c0_10 = arith.constant 0 : index
    %c0_11 = arith.constant 0 : index
    %c0_12 = arith.constant 0 : index
    %11 = vector.load %arg5[%c0_10, %c0_11, %c0_12] : memref<3x1x128xf32, #tpu.memory_space<vmem>>, vector<1x1x128xf32>
    %12 = vector.shape_cast %11 : vector<1x1x128xf32> to vector<1x128xf32>
    %13 = vector.broadcast %12 : vector<1x128xf32> to vector<8x128xf32>
    %14 = arith.addf %10, %13 : vector<8x128xf32>
    %cst_13 = arith.constant 0.000000e+00 : f32
    %15 = vector.broadcast %cst_13 : f32 to vector<8x128xf32>
    %16 = arith.maximumf %14, %15 : vector<8x128xf32>
    %c1 = arith.constant 1 : index
    %c0_14 = arith.constant 0 : index
    %c0_15 = arith.constant 0 : index
    %17 = vector.load %arg4[%c1, %c0_14, %c0_15] : memref<3x128x128xf32, #tpu.memory_space<vmem>>, vector<1x128x128xf32>
    %18 = vector.shape_cast %17 : vector<1x128x128xf32> to vector<128x128xf32>
    %cst_16 = arith.constant dense<0.000000e+00> : vector<8x128xf32>
    %19 = tpu.matmul %16, %18, %cst_16 {dimension_numbers = #tpu.dot_dimension_numbers<[1], [0], [0], [1], [0, 0, 1, 1], [], []>} : vector<8x128xf32>, vector<128x128xf32>, vector<8x128xf32> -> vector<8x128xf32>
    %c1_17 = arith.constant 1 : index
    %c0_18 = arith.constant 0 : index
    %c0_19 = arith.constant 0 : index
    %20 = vector.load %arg5[%c1_17, %c0_18, %c0_19] : memref<3x1x128xf32, #tpu.memory_space<vmem>>, vector<1x1x128xf32>
    %21 = vector.shape_cast %20 : vector<1x1x128xf32> to vector<1x128xf32>
    %22 = vector.broadcast %21 : vector<1x128xf32> to vector<8x128xf32>
    %23 = arith.addf %19, %22 : vector<8x128xf32>
    %cst_20 = arith.constant 0.000000e+00 : f32
    %24 = vector.broadcast %cst_20 : f32 to vector<8x128xf32>
    %25 = arith.maximumf %23, %24 : vector<8x128xf32>
    %c2 = arith.constant 2 : index
    %c0_21 = arith.constant 0 : index
    %c0_22 = arith.constant 0 : index
    %26 = vector.load %arg4[%c2, %c0_21, %c0_22] : memref<3x128x128xf32, #tpu.memory_space<vmem>>, vector<1x128x128xf32>
    %27 = vector.shape_cast %26 : vector<1x128x128xf32> to vector<128x128xf32>
    %cst_23 = arith.constant dense<0.000000e+00> : vector<8x128xf32>
    %28 = tpu.matmul %25, %27, %cst_23 {dimension_numbers = #tpu.dot_dimension_numbers<[1], [0], [0], [1], [0, 0, 1, 1], [], []>} : vector<8x128xf32>, vector<128x128xf32>, vector<8x128xf32> -> vector<8x128xf32>
    %c2_24 = arith.constant 2 : index
    %c0_25 = arith.constant 0 : index
    %c0_26 = arith.constant 0 : index
    %29 = vector.load %arg5[%c2_24, %c0_25, %c0_26] : memref<3x1x128xf32, #tpu.memory_space<vmem>>, vector<1x1x128xf32>
    %30 = vector.shape_cast %29 : vector<1x1x128xf32> to vector<1x128xf32>
    %31 = vector.broadcast %30 : vector<1x128xf32> to vector<8x128xf32>
    %32 = arith.addf %28, %31 : vector<8x128xf32>
    %cst_27 = arith.constant 0.000000e+00 : f32
    %33 = vector.broadcast %cst_27 : f32 to vector<8x128xf32>
    %34 = arith.maximumf %32, %33 : vector<8x128xf32>
    %c0_28 = arith.constant 0 : index
    %c0_29 = arith.constant 0 : index
    %35 = vector.load %arg6[%c0_28, %c0_29] : memref<128x128xf32, #tpu.memory_space<vmem>>, vector<128x128xf32>
    %cst_30 = arith.constant dense<0.000000e+00> : vector<8x128xf32>
    %36 = tpu.matmul %34, %35, %cst_30 {dimension_numbers = #tpu.dot_dimension_numbers<[1], [0], [0], [1], [0, 0, 1, 1], [], []>} : vector<8x128xf32>, vector<128x128xf32>, vector<8x128xf32> -> vector<8x128xf32>
    %c0_31 = arith.constant 0 : index
    %c0_32 = arith.constant 0 : index
    %37 = vector.load %arg7[%c0_31, %c0_32] : memref<1x128xf32, #tpu.memory_space<vmem>>, vector<1x128xf32>
    %38 = vector.broadcast %37 : vector<1x128xf32> to vector<8x128xf32>
    %39 = arith.addf %36, %38 : vector<8x128xf32>
    %c0_33 = arith.constant 0 : index
    %c0_34 = arith.constant 0 : index
    %40 = vector.load %arg8[%c0_33, %c0_34] : memref<8x128xf32, #tpu.memory_space<vmem>>, vector<8x128xf32>
    tpu.vector_store %arg8[%c0_33, %c0_34], %39 {strides = array<i32>} : memref<8x128xf32, #tpu.memory_space<vmem>>, vector<8x128xf32>,
    return
  }
  func.func @transform_0(%arg0: i32) -> (i32, i32) {
    %c0_i32 = arith.constant 0 : i32
    %c0_i32_0 = arith.constant 0 : i32
    return %arg0, %c0_i32 : i32, i32
  }
  func.func @transform_1(%arg0: i32) -> (i32, i32) {
    %c0_i32 = arith.constant 0 : i32
    %c0_i32_0 = arith.constant 0 : i32
    %c0_i32_1 = arith.constant 0 : i32
    return %c0_i32, %c0_i32_0 : i32, i32
  }
  func.func @transform_2(%arg0: i32) -> (i32, i32) {
    %c0_i32 = arith.constant 0 : i32
    %c0_i32_0 = arith.constant 0 : i32
    %c0_i32_1 = arith.constant 0 : i32
    return %c0_i32, %c0_i32_0 : i32, i32
  }
  func.func @transform_3(%arg0: i32) -> (i32, i32, i32) {
    %c0_i32 = arith.constant 0 : i32
    %c0_i32_0 = arith.constant 0 : i32
    %c0_i32_1 = arith.constant 0 : i32
    %c0_i32_2 = arith.constant 0 : i32
    return %c0_i32, %c0_i32_0, %c0_i32_1 : i32, i32, i32
  }
  func.func @transform_4(%arg0: i32) -> (i32, i32, i32) {
    %c0_i32 = arith.constant 0 : i32
    %c0_i32_0 = arith.constant 0 : i32
    %c0_i32_1 = arith.constant 0 : i32
    %c0_i32_2 = arith.constant 0 : i32
    return %c0_i32, %c0_i32_0, %c0_i32_1 : i32, i32, i32
  }
  func.func @transform_5(%arg0: i32) -> (i32, i32) {
    %c0_i32 = arith.constant 0 : i32
    %c0_i32_0 = arith.constant 0 : i32
    %c0_i32_1 = arith.constant 0 : i32
    return %c0_i32, %c0_i32_0 : i32, i32
  }
  func.func @transform_6(%arg0: i32) -> (i32, i32) {
    %c0_i32 = arith.constant 0 : i32
    %c0_i32_0 = arith.constant 0 : i32
    %c0_i32_1 = arith.constant 0 : i32
    return %c0_i32, %c0_i32_0 : i32, i32
  }
  func.func @transform_7(%arg0: i32) -> (i32, i32) {
    %c0_i32 = arith.constant 0 : i32
    %c0_i32_0 = arith.constant 0 : i32
    return %arg0, %c0_i32 : i32, i32
  }
}

</mosaic_0001>

<llo_original>
// kernel: mlp_forward.1
$region0: #{mlp_forward.1}
  #allocation0 [shape = 'u32[]', space=smem, size = 0x4, offset = 0x4, fixed_abs, tag = 'smem constant byte address 0x4 - core index']
  #allocation1 [shape = 'u32[144,128]{1,0:T(1,128)}', space=vmem, size = 0x12000, scoped, tag = 'internal scratch']
  %s0 = inlined_call_operand.vmem [shape: f32[8,128], index: 0, kind: input, shape index: {}]
  %s1 = inlined_call_operand.vmem [shape: f32[128,128], index: 1, kind: input, shape index: {}]
  %s2 = inlined_call_operand.vmem [shape: f32[1,128], index: 2, kind: input, shape index: {}]
  %s3 = inlined_call_operand.vmem [shape: f32[3,128,128], index: 3, kind: input, shape index: {}]
  %s4 = inlined_call_operand.vmem [shape: f32[3,1,128], index: 4, kind: input, shape index: {}]
  %s5 = inlined_call_operand.vmem [shape: f32[128,128], index: 5, kind: input, shape index: {}]
  %s6 = inlined_call_operand.vmem [shape: f32[1,128], index: 6, kind: input, shape index: {}]
  %s7 = inlined_call_operand.vmem [shape: f32[8,128], index: 7, kind: output, shape index: {}]
  %s8 = sld [smem:[#allocation0]]
  $region38: #{mlp_forward.1} parent=0
    _
  %s10 = ssub.s32 1, %s8
  %s11 = scalar_select 0, %s10, %s8
  // Predicated region
  $region2: #{mlp_forward.1} parent=0 // pred_check
    _
  $region3: #{mlp_forward.1} parent=0 // pred_check_branch
    %13 = sbr.rel (0) target = $region5
  $region4: #{mlp_forward.1} parent=0 // pred_region
    _
  $region5: #{mlp_forward.1} parent=0 // pred_fallthru
    _
  // Predicated region
  $region6: #{mlp_forward.1} parent=0 // pred_check
    _
  $region7: #{mlp_forward.1} parent=0 // pred_check_branch
    %15 = sbr.rel (0) target = $region9
  $region8: #{mlp_forward.1} parent=0 // pred_region
    _
  $region9: #{mlp_forward.1} parent=0 // pred_fallthru
    _
  // Predicated region
  $region10: #{mlp_forward.1} parent=0 // pred_check
    _
  $region11: #{mlp_forward.1} parent=0 // pred_check_branch
    %17 = sbr.rel (0) target = $region13
  $region12: #{mlp_forward.1} parent=0 // pred_region
    _
  $region13: #{mlp_forward.1} parent=0 // pred_fallthru
    _
  // Predicated region
  $region14: #{mlp_forward.1} parent=0 // pred_check
    _
  $region15: #{mlp_forward.1} parent=0 // pred_check_branch
    %19 = sbr.rel (0) target = $region17
  $region16: #{mlp_forward.1} parent=0 // pred_region
    _
  $region17: #{mlp_forward.1} parent=0 // pred_fallthru
    _
  // Predicated region
  $region18: #{mlp_forward.1} parent=0 // pred_check
    _
  $region19: #{mlp_forward.1} parent=0 // pred_check_branch
    %21 = sbr.rel (0) target = $region21
  $region20: #{mlp_forward.1} parent=0 // pred_region
    _
  $region21: #{mlp_forward.1} parent=0 // pred_fallthru
    _
  // Predicated region
  $region22: #{mlp_forward.1} parent=0 // pred_check
    _
  $region23: #{mlp_forward.1} parent=0 // pred_check_branch
    %23 = sbr.rel (0) target = $region25
  $region24: #{mlp_forward.1} parent=0 // pred_region
    _
  $region25: #{mlp_forward.1} parent=0 // pred_fallthru
    _
  // Predicated region
  $region26: #{mlp_forward.1} parent=0 // pred_check
    _
  $region27: #{mlp_forward.1} parent=0 // pred_check_branch
    %25 = sbr.rel (0) target = $region29
  $region28: #{mlp_forward.1} parent=0 // pred_region
    _
  $region29: #{mlp_forward.1} parent=0 // pred_fallthru
    _
  %v26 = vld [vmem:[%s0] sm:$0xff]
  %v27 = vld [vmem:[%s1] sm:$0xff]
  %v28 = vld [vmem:[%s1 + $0x8] sm:$0xff]
  %v29 = vld [vmem:[%s1 + $0x10] sm:$0xff]
  %v30 = vld [vmem:[%s1 + $0x18] sm:$0xff]
  %v31 = vld [vmem:[%s1 + $0x20] sm:$0xff]
  %v32 = vld [vmem:[%s1 + $0x28] sm:$0xff]
  %v33 = vld [vmem:[%s1 + $0x30] sm:$0xff]
  %v34 = vld [vmem:[%s1 + $0x38] sm:$0xff]
  %v35 = vld [vmem:[%s1 + $0x40] sm:$0xff]
  %v36 = vld [vmem:[%s1 + $0x48] sm:$0xff]
  %v37 = vld [vmem:[%s1 + $0x50] sm:$0xff]
  %v38 = vld [vmem:[%s1 + $0x58] sm:$0xff]
  %v39 = vld [vmem:[%s1 + $0x60] sm:$0xff]
  %v40 = vld [vmem:[%s1 + $0x68] sm:$0xff]
  %v41 = vld [vmem:[%s1 + $0x70] sm:$0xff]
  %v42 = vld [vmem:[%s1 + $0x78] sm:$0xff]
  %v43 = vld [vmem:[%s2] sm:$0x1]
  %v45 = vlaneseq
  %v46 = vshrl.u32 %v45, 7
  %v47 = vsub.s32 0, %v46
  %v48 = vrot.slane %v43, %v47
  %50 = vmatprep.subr.mxu0 0.0
  %51 = vmatpush1.msra.mxu0 %v27
  %52 = vmatprep.subr.mxu0 0.0
  %53 = vmatpush1.msra.mxu0 %v28
  %54 = vmatprep.subr.mxu0 0.0
  %55 = vmatpush1.msra.mxu0 %v29
  %56 = vmatprep.subr.mxu0 0.0
  %57 = vmatpush1.msra.mxu0 %v30
  %58 = vmatprep.subr.mxu0 0.0
  %59 = vmatpush1.msra.mxu0 %v31
  %60 = vmatprep.subr.mxu0 0.0
  %61 = vmatpush1.msra.mxu0 %v32
  %62 = vmatprep.subr.mxu0 0.0
  %63 = vmatpush1.msra.mxu0 %v33
  %64 = vmatprep.subr.mxu0 0.0
  %65 = vmatpush1.msra.mxu0 %v34
  %66 = vmatprep.subr.mxu0 0.0
  %67 = vmatpush1.msra.mxu0 %v35
  %68 = vmatprep.subr.mxu0 0.0
  %69 = vmatpush1.msra.mxu0 %v36
  %70 = vmatprep.subr.mxu0 0.0
  %71 = vmatpush1.msra.mxu0 %v37
  %72 = vmatprep.subr.mxu0 0.0
  %73 = vmatpush1.msra.mxu0 %v38
  %74 = vmatprep.subr.mxu0 0.0
  %75 = vmatpush1.msra.mxu0 %v39
  %76 = vmatprep.subr.mxu0 0.0
  %77 = vmatpush1.msra.mxu0 %v40
  %78 = vmatprep.subr.mxu0 0.0
  %79 = vmatpush1.msra.mxu0 %v41
  %80 = vmatprep.subr.mxu0 0.0
  %81 = vmatpush1.msra.mxu0 %v42
  %82 = vmatprep.subr.mxu0 0.0
  %83 = vmatpush1.msra.mxu0 0.0
  %84 = vmatprep.subr.mxu0 0.0
  %85 = vmatpush1.msra.mxu0 0.0
  %86 = vmatprep.subr.mxu0 0.0
  %87 = vmatpush1.msra.mxu0 0.0
  %88 = vmatprep.subr.mxu0 0.0
  %89 = vmatpush1.msra.mxu0 0.0
  %90 = vmatprep.subr.mxu0 0.0
  %91 = vmatpush1.msra.mxu0 0.0
  %92 = vmatprep.subr.mxu0 0.0
  %93 = vmatpush1.msra.mxu0 0.0
  %94 = vmatprep.subr.mxu0 0.0
  %95 = vmatpush1.msra.mxu0 0.0
  %96 = vmatprep.subr.mxu0 0.0
  %97 = vmatpush1.msra.mxu0 0.0
  %98 = vmatprep.subr.mxu0 0.0
  %99 = vmatpush1.msra.mxu0 0.0
  %100 = vmatprep.subr.mxu0 0.0
  %101 = vmatpush1.msra.mxu0 0.0
  %102 = vmatprep.subr.mxu0 0.0
  %103 = vmatpush1.msra.mxu0 0.0
  %104 = vmatprep.subr.mxu0 0.0
  %105 = vmatpush1.msra.mxu0 0.0
  %106 = vmatprep.subr.mxu0 0.0
  %107 = vmatpush1.msra.mxu0 0.0
  %108 = vmatprep.subr.mxu0 0.0
  %109 = vmatpush1.msra.mxu0 0.0
  %110 = vmatprep.subr.mxu0 0.0
  %111 = vmatpush1.msra.mxu0 0.0
  %112 = vmatprep.subr.mxu0 0.0
  %113 = vmatpush1.msra.mxu0 0.0
  %114 = vmatprep.mubr.f32.mxu0 0.0
  %115 = vmatmul.mubr.f32.gmra.mrb[0].mxu0 %v26
  %v116 = vpop.f32.mrb[0].mxu0
  %v117 = vadd.f32 %v48, %v116
  %v118 = vpop.f32.mrb[0].mxu0
  %119 = vdwg.mxu0
  %v120 = vmax.f32 %v117, 0.0
  %v121 = vld [vmem:[%s3] sm:$0xff]
  %v122 = vld [vmem:[%s3 + $0x8] sm:$0xff]
  %v123 = vld [vmem:[%s3 + $0x10] sm:$0xff]
  %v124 = vld [vmem:[%s3 + $0x18] sm:$0xff]
  %v125 = vld [vmem:[%s3 + $0x20] sm:$0xff]
  %v126 = vld [vmem:[%s3 + $0x28] sm:$0xff]
  %v127 = vld [vmem:[%s3 + $0x30] sm:$0xff]
  %v128 = vld [vmem:[%s3 + $0x38] sm:$0xff]
  %v129 = vld [vmem:[%s3 + $0x40] sm:$0xff]
  %v130 = vld [vmem:[%s3 + $0x48] sm:$0xff]
  %v131 = vld [vmem:[%s3 + $0x50] sm:$0xff]
  %v132 = vld [vmem:[%s3 + $0x58] sm:$0xff]
  %v133 = vld [vmem:[%s3 + $0x60] sm:$0xff]
  %v134 = vld [vmem:[%s3 + $0x68] sm:$0xff]
  %v135 = vld [vmem:[%s3 + $0x70] sm:$0xff]
  %v136 = vld [vmem:[%s3 + $0x78] sm:$0xff]
  %v137 = vld [vmem:[%s4] sm:$0x1]
  %v139 = vlaneseq
  %v140 = vshrl.u32 %v139, 7
  %v141 = vsub.s32 0, %v140
  %v142 = vrot.slane %v137, %v141
  %144 = vmatprep.subr.mxu0 0.0
  %145 = vmatpush1.msra.mxu0 %v121
  %146 = vmatprep.subr.mxu0 0.0
  %147 = vmatpush1.msra.mxu0 %v122
  %148 = vmatprep.subr.mxu0 0.0
  %149 = vmatpush1.msra.mxu0 %v123
  %150 = vmatprep.subr.mxu0 0.0
  %151 = vmatpush1.msra.mxu0 %v124
  %152 = vmatprep.subr.mxu0 0.0
  %153 = vmatpush1.msra.mxu0 %v125
  %154 = vmatprep.subr.mxu0 0.0
  %155 = vmatpush1.msra.mxu0 %v126
  %156 = vmatprep.subr.mxu0 0.0
  %157 = vmatpush1.msra.mxu0 %v127
  %158 = vmatprep.subr.mxu0 0.0
  %159 = vmatpush1.msra.mxu0 %v128
  %160 = vmatprep.subr.mxu0 0.0
  %161 = vmatpush1.msra.mxu0 %v129
  %162 = vmatprep.subr.mxu0 0.0
  %163 = vmatpush1.msra.mxu0 %v130
  %164 = vmatprep.subr.mxu0 0.0
  %165 = vmatpush1.msra.mxu0 %v131
  %166 = vmatprep.subr.mxu0 0.0
  %167 = vmatpush1.msra.mxu0 %v132
  %168 = vmatprep.subr.mxu0 0.0
  %169 = vmatpush1.msra.mxu0 %v133
  %170 = vmatprep.subr.mxu0 0.0
  %171 = vmatpush1.msra.mxu0 %v134
  %172 = vmatprep.subr.mxu0 0.0
  %173 = vmatpush1.msra.mxu0 %v135
  %174 = vmatprep.subr.mxu0 0.0
  %175 = vmatpush1.msra.mxu0 %v136
  %176 = vmatprep.subr.mxu0 0.0
  %177 = vmatpush1.msra.mxu0 0.0
  %178 = vmatprep.subr.mxu0 0.0
  %179 = vmatpush1.msra.mxu0 0.0
  %180 = vmatprep.subr.mxu0 0.0
  %181 = vmatpush1.msra.mxu0 0.0
  %182 = vmatprep.subr.mxu0 0.0
  %183 = vmatpush1.msra.mxu0 0.0
  %184 = vmatprep.subr.mxu0 0.0
  %185 = vmatpush1.msra.mxu0 0.0
  %186 = vmatprep.subr.mxu0 0.0
  %187 = vmatpush1.msra.mxu0 0.0
  %188 = vmatprep.subr.mxu0 0.0
  %189 = vmatpush1.msra.mxu0 0.0
  %190 = vmatprep.subr.mxu0 0.0
  %191 = vmatpush1.msra.mxu0 0.0
  %192 = vmatprep.subr.mxu0 0.0
  %193 = vmatpush1.msra.mxu0 0.0
  %194 = vmatprep.subr.mxu0 0.0
  %195 = vmatpush1.msra.mxu0 0.0
  %196 = vmatprep.subr.mxu0 0.0
  %197 = vmatpush1.msra.mxu0 0.0
  %198 = vmatprep.subr.mxu0 0.0
  %199 = vmatpush1.msra.mxu0 0.0
  %200 = vmatprep.subr.mxu0 0.0
  %201 = vmatpush1.msra.mxu0 0.0
  %202 = vmatprep.subr.mxu0 0.0
  %203 = vmatpush1.msra.mxu0 0.0
  %204 = vmatprep.subr.mxu0 0.0
  %205 = vmatpush1.msra.mxu0 0.0
  %206 = vmatprep.subr.mxu0 0.0
  %207 = vmatpush1.msra.mxu0 0.0
  %208 = vmatprep.mubr.f32.mxu0 0.0
  %209 = vmatmul.mubr.f32.gmra.mrb[0].mxu0 %v120
  %v210 = vpop.f32.mrb[0].mxu0
  %v211 = vadd.f32 %v142, %v210
  %v212 = vpop.f32.mrb[0].mxu0
  %213 = vdwg.mxu0
  %v214 = vmax.f32 %v211, 0.0
  %s215 = scalar_lea.vmem %s3, 128
  %v216 = vld [vmem:[%s215] sm:$0xff]
  %v217 = vld [vmem:[%s215 + $0x8] sm:$0xff]
  %v218 = vld [vmem:[%s215 + $0x10] sm:$0xff]
  %v219 = vld [vmem:[%s215 + $0x18] sm:$0xff]
  %v220 = vld [vmem:[%s215 + $0x20] sm:$0xff]
  %v221 = vld [vmem:[%s215 + $0x28] sm:$0xff]
  %v222 = vld [vmem:[%s215 + $0x30] sm:$0xff]
  %v223 = vld [vmem:[%s215 + $0x38] sm:$0xff]
  %v224 = vld [vmem:[%s215 + $0x40] sm:$0xff]
  %v225 = vld [vmem:[%s215 + $0x48] sm:$0xff]
  %v226 = vld [vmem:[%s215 + $0x50] sm:$0xff]
  %v227 = vld [vmem:[%s215 + $0x58] sm:$0xff]
  %v228 = vld [vmem:[%s215 + $0x60] sm:$0xff]
  %v229 = vld [vmem:[%s215 + $0x68] sm:$0xff]
  %v230 = vld [vmem:[%s215 + $0x70] sm:$0xff]
  %v231 = vld [vmem:[%s215 + $0x78] sm:$0xff]
  %s232 = scalar_lea.vmem %s4, 1
  %v233 = vld [vmem:[%s232] sm:$0x1]
  %v235 = vlaneseq
  %v236 = vshrl.u32 %v235, 7
  %v237 = vsub.s32 0, %v236
  %v238 = vrot.slane %v233, %v237
  %240 = vmatprep.subr.mxu0 0.0
  %241 = vmatpush1.msra.mxu0 %v216
  %242 = vmatprep.subr.mxu0 0.0
  %243 = vmatpush1.msra.mxu0 %v217
  %244 = vmatprep.subr.mxu0 0.0
  %245 = vmatpush1.msra.mxu0 %v218
  %246 = vmatprep.subr.mxu0 0.0
  %247 = vmatpush1.msra.mxu0 %v219
  %248 = vmatprep.subr.mxu0 0.0
  %249 = vmatpush1.msra.mxu0 %v220
  %250 = vmatprep.subr.mxu0 0.0
  %251 = vmatpush1.msra.mxu0 %v221
  %252 = vmatprep.subr.mxu0 0.0
  %253 = vmatpush1.msra.mxu0 %v222
  %254 = vmatprep.subr.mxu0 0.0
  %255 = vmatpush1.msra.mxu0 %v223
  %256 = vmatprep.subr.mxu0 0.0
  %257 = vmatpush1.msra.mxu0 %v224
  %258 = vmatprep.subr.mxu0 0.0
  %259 = vmatpush1.msra.mxu0 %v225
  %260 = vmatprep.subr.mxu0 0.0
  %261 = vmatpush1.msra.mxu0 %v226
  %262 = vmatprep.subr.mxu0 0.0
  %263 = vmatpush1.msra.mxu0 %v227
  %264 = vmatprep.subr.mxu0 0.0
  %265 = vmatpush1.msra.mxu0 %v228
  %266 = vmatprep.subr.mxu0 0.0
  %267 = vmatpush1.msra.mxu0 %v229
  %268 = vmatprep.subr.mxu0 0.0
  %269 = vmatpush1.msra.mxu0 %v230
  %270 = vmatprep.subr.mxu0 0.0
  %271 = vmatpush1.msra.mxu0 %v231
  %272 = vmatprep.subr.mxu0 0.0
  %273 = vmatpush1.msra.mxu0 0.0
  %274 = vmatprep.subr.mxu0 0.0
  %275 = vmatpush1.msra.mxu0 0.0
  %276 = vmatprep.subr.mxu0 0.0
  %277 = vmatpush1.msra.mxu0 0.0
  %278 = vmatprep.subr.mxu0 0.0
  %279 = vmatpush1.msra.mxu0 0.0
  %280 = vmatprep.subr.mxu0 0.0
  %281 = vmatpush1.msra.mxu0 0.0
  %282 = vmatprep.subr.mxu0 0.0
  %283 = vmatpush1.msra.mxu0 0.0
  %284 = vmatprep.subr.mxu0 0.0
  %285 = vmatpush1.msra.mxu0 0.0
  %286 = vmatprep.subr.mxu0 0.0
  %287 = vmatpush1.msra.mxu0 0.0
  %288 = vmatprep.subr.mxu0 0.0
  %289 = vmatpush1.msra.mxu0 0.0
  %290 = vmatprep.subr.mxu0 0.0
  %291 = vmatpush1.msra.mxu0 0.0
  %292 = vmatprep.subr.mxu0 0.0
  %293 = vmatpush1.msra.mxu0 0.0
  %294 = vmatprep.subr.mxu0 0.0
  %295 = vmatpush1.msra.mxu0 0.0
  %296 = vmatprep.subr.mxu0 0.0
  %297 = vmatpush1.msra.mxu0 0.0
  %298 = vmatprep.subr.mxu0 0.0
  %299 = vmatpush1.msra.mxu0 0.0
  %300 = vmatprep.subr.mxu0 0.0
  %301 = vmatpush1.msra.mxu0 0.0
  %302 = vmatprep.subr.mxu0 0.0
  %303 = vmatpush1.msra.mxu0 0.0
  %304 = vmatprep.mubr.f32.mxu0 0.0
  %305 = vmatmul.mubr.f32.gmra.mrb[0].mxu0 %v214
  %v306 = vpop.f32.mrb[0].mxu0
  %v307 = vadd.f32 %v238, %v306
  %v308 = vpop.f32.mrb[0].mxu0
  %309 = vdwg.mxu0
  %v310 = vmax.f32 %v307, 0.0
  %s311 = scalar_lea.vmem %s3, 256
  %v312 = vld [vmem:[%s311] sm:$0xff]
  %v313 = vld [vmem:[%s311 + $0x8] sm:$0xff]
  %v314 = vld [vmem:[%s311 + $0x10] sm:$0xff]
  %v315 = vld [vmem:[%s311 + $0x18] sm:$0xff]
  %v316 = vld [vmem:[%s311 + $0x20] sm:$0xff]
  %v317 = vld [vmem:[%s311 + $0x28] sm:$0xff]
  %v318 = vld [vmem:[%s311 + $0x30] sm:$0xff]
  %v319 = vld [vmem:[%s311 + $0x38] sm:$0xff]
  %v320 = vld [vmem:[%s311 + $0x40] sm:$0xff]
  %v321 = vld [vmem:[%s311 + $0x48] sm:$0xff]
  %v322 = vld [vmem:[%s311 + $0x50] sm:$0xff]
  %v323 = vld [vmem:[%s311 + $0x58] sm:$0xff]
  %v324 = vld [vmem:[%s311 + $0x60] sm:$0xff]
  %v325 = vld [vmem:[%s311 + $0x68] sm:$0xff]
  %v326 = vld [vmem:[%s311 + $0x70] sm:$0xff]
  %v327 = vld [vmem:[%s311 + $0x78] sm:$0xff]
  %s328 = scalar_lea.vmem %s4, 2
  %v329 = vld [vmem:[%s328] sm:$0x1]
  %v331 = vlaneseq
  %v332 = vshrl.u32 %v331, 7
  %v333 = vsub.s32 0, %v332
  %v334 = vrot.slane %v329, %v333
  %336 = vmatprep.subr.mxu0 0.0
  %337 = vmatpush1.msra.mxu0 %v312
  %338 = vmatprep.subr.mxu0 0.0
  %339 = vmatpush1.msra.mxu0 %v313
  %340 = vmatprep.subr.mxu0 0.0
  %341 = vmatpush1.msra.mxu0 %v314
  %342 = vmatprep.subr.mxu0 0.0
  %343 = vmatpush1.msra.mxu0 %v315
  %344 = vmatprep.subr.mxu0 0.0
  %345 = vmatpush1.msra.mxu0 %v316
  %346 = vmatprep.subr.mxu0 0.0
  %347 = vmatpush1.msra.mxu0 %v317
  %348 = vmatprep.subr.mxu0 0.0
  %349 = vmatpush1.msra.mxu0 %v318
  %350 = vmatprep.subr.mxu0 0.0
  %351 = vmatpush1.msra.mxu0 %v319
  %352 = vmatprep.subr.mxu0 0.0
  %353 = vmatpush1.msra.mxu0 %v320
  %354 = vmatprep.subr.mxu0 0.0
  %355 = vmatpush1.msra.mxu0 %v321
  %356 = vmatprep.subr.mxu0 0.0
  %357 = vmatpush1.msra.mxu0 %v322
  %358 = vmatprep.subr.mxu0 0.0
  %359 = vmatpush1.msra.mxu0 %v323
  %360 = vmatprep.subr.mxu0 0.0
  %361 = vmatpush1.msra.mxu0 %v324
  %362 = vmatprep.subr.mxu0 0.0
  %363 = vmatpush1.msra.mxu0 %v325
  %364 = vmatprep.subr.mxu0 0.0
  %365 = vmatpush1.msra.mxu0 %v326
  %366 = vmatprep.subr.mxu0 0.0
  %367 = vmatpush1.msra.mxu0 %v327
  %368 = vmatprep.subr.mxu0 0.0
  %369 = vmatpush1.msra.mxu0 0.0
  %370 = vmatprep.subr.mxu0 0.0
  %371 = vmatpush1.msra.mxu0 0.0
  %372 = vmatprep.subr.mxu0 0.0
  %373 = vmatpush1.msra.mxu0 0.0
  %374 = vmatprep.subr.mxu0 0.0
  %375 = vmatpush1.msra.mxu0 0.0
  %376 = vmatprep.subr.mxu0 0.0
  %377 = vmatpush1.msra.mxu0 0.0
  %378 = vmatprep.subr.mxu0 0.0
  %379 = vmatpush1.msra.mxu0 0.0
  %380 = vmatprep.subr.mxu0 0.0
  %381 = vmatpush1.msra.mxu0 0.0
  %382 = vmatprep.subr.mxu0 0.0
  %383 = vmatpush1.msra.mxu0 0.0
  %384 = vmatprep.subr.mxu0 0.0
  %385 = vmatpush1.msra.mxu0 0.0
  %386 = vmatprep.subr.mxu0 0.0
  %387 = vmatpush1.msra.mxu0 0.0
  %388 = vmatprep.subr.mxu0 0.0
  %389 = vmatpush1.msra.mxu0 0.0
  %390 = vmatprep.subr.mxu0 0.0
  %391 = vmatpush1.msra.mxu0 0.0
  %392 = vmatprep.subr.mxu0 0.0
  %393 = vmatpush1.msra.mxu0 0.0
  %394 = vmatprep.subr.mxu0 0.0
  %395 = vmatpush1.msra.mxu0 0.0
  %396 = vmatprep.subr.mxu0 0.0
  %397 = vmatpush1.msra.mxu0 0.0
  %398 = vmatprep.subr.mxu0 0.0
  %399 = vmatpush1.msra.mxu0 0.0
  %400 = vmatprep.mubr.f32.mxu0 0.0
  %401 = vmatmul.mubr.f32.gmra.mrb[0].mxu0 %v310
  %v402 = vpop.f32.mrb[0].mxu0
  %v403 = vadd.f32 %v334, %v402
  %v404 = vpop.f32.mrb[0].mxu0
  %405 = vdwg.mxu0
  %v406 = vmax.f32 %v403, 0.0
  %v407 = vld [vmem:[%s5] sm:$0xff]
  %v408 = vld [vmem:[%s5 + $0x8] sm:$0xff]
  %v409 = vld [vmem:[%s5 + $0x10] sm:$0xff]
  %v410 = vld [vmem:[%s5 + $0x18] sm:$0xff]
  %v411 = vld [vmem:[%s5 + $0x20] sm:$0xff]
  %v412 = vld [vmem:[%s5 + $0x28] sm:$0xff]
  %v413 = vld [vmem:[%s5 + $0x30] sm:$0xff]
  %v414 = vld [vmem:[%s5 + $0x38] sm:$0xff]
  %v415 = vld [vmem:[%s5 + $0x40] sm:$0xff]
  %v416 = vld [vmem:[%s5 + $0x48] sm:$0xff]
  %v417 = vld [vmem:[%s5 + $0x50] sm:$0xff]
  %v418 = vld [vmem:[%s5 + $0x58] sm:$0xff]
  %v419 = vld [vmem:[%s5 + $0x60] sm:$0xff]
  %v420 = vld [vmem:[%s5 + $0x68] sm:$0xff]
  %v421 = vld [vmem:[%s5 + $0x70] sm:$0xff]
  %v422 = vld [vmem:[%s5 + $0x78] sm:$0xff]
  %v423 = vld [vmem:[%s6] sm:$0x1]
  %v425 = vlaneseq
  %v426 = vshrl.u32 %v425, 7
  %v427 = vsub.s32 0, %v426
  %v428 = vrot.slane %v423, %v427
  %430 = vmatprep.subr.mxu0 0.0
  %431 = vmatpush1.msra.mxu0 %v407
  %432 = vmatprep.subr.mxu0 0.0
  %433 = vmatpush1.msra.mxu0 %v408
  %434 = vmatprep.subr.mxu0 0.0
  %435 = vmatpush1.msra.mxu0 %v409
  %436 = vmatprep.subr.mxu0 0.0
  %437 = vmatpush1.msra.mxu0 %v410
  %438 = vmatprep.subr.mxu0 0.0
  %439 = vmatpush1.msra.mxu0 %v411
  %440 = vmatprep.subr.mxu0 0.0
  %441 = vmatpush1.msra.mxu0 %v412
  %442 = vmatprep.subr.mxu0 0.0
  %443 = vmatpush1.msra.mxu0 %v413
  %444 = vmatprep.subr.mxu0 0.0
  %445 = vmatpush1.msra.mxu0 %v414
  %446 = vmatprep.subr.mxu0 0.0
  %447 = vmatpush1.msra.mxu0 %v415
  %448 = vmatprep.subr.mxu0 0.0
  %449 = vmatpush1.msra.mxu0 %v416
  %450 = vmatprep.subr.mxu0 0.0
  %451 = vmatpush1.msra.mxu0 %v417
  %452 = vmatprep.subr.mxu0 0.0
  %453 = vmatpush1.msra.mxu0 %v418
  %454 = vmatprep.subr.mxu0 0.0
  %455 = vmatpush1.msra.mxu0 %v419
  %456 = vmatprep.subr.mxu0 0.0
  %457 = vmatpush1.msra.mxu0 %v420
  %458 = vmatprep.subr.mxu0 0.0
  %459 = vmatpush1.msra.mxu0 %v421
  %460 = vmatprep.subr.mxu0 0.0
  %461 = vmatpush1.msra.mxu0 %v422
  %462 = vmatprep.subr.mxu0 0.0
  %463 = vmatpush1.msra.mxu0 0.0
  %464 = vmatprep.subr.mxu0 0.0
  %465 = vmatpush1.msra.mxu0 0.0
  %466 = vmatprep.subr.mxu0 0.0
  %467 = vmatpush1.msra.mxu0 0.0
  %468 = vmatprep.subr.mxu0 0.0
  %469 = vmatpush1.msra.mxu0 0.0
  %470 = vmatprep.subr.mxu0 0.0
  %471 = vmatpush1.msra.mxu0 0.0
  %472 = vmatprep.subr.mxu0 0.0
  %473 = vmatpush1.msra.mxu0 0.0
  %474 = vmatprep.subr.mxu0 0.0
  %475 = vmatpush1.msra.mxu0 0.0
  %476 = vmatprep.subr.mxu0 0.0
  %477 = vmatpush1.msra.mxu0 0.0
  %478 = vmatprep.subr.mxu0 0.0
  %479 = vmatpush1.msra.mxu0 0.0
  %480 = vmatprep.subr.mxu0 0.0
  %481 = vmatpush1.msra.mxu0 0.0
  %482 = vmatprep.subr.mxu0 0.0
  %483 = vmatpush1.msra.mxu0 0.0
  %484 = vmatprep.subr.mxu0 0.0
  %485 = vmatpush1.msra.mxu0 0.0
  %486 = vmatprep.subr.mxu0 0.0
  %487 = vmatpush1.msra.mxu0 0.0
  %488 = vmatprep.subr.mxu0 0.0
  %489 = vmatpush1.msra.mxu0 0.0
  %490 = vmatprep.subr.mxu0 0.0
  %491 = vmatpush1.msra.mxu0 0.0
  %492 = vmatprep.subr.mxu0 0.0
  %493 = vmatpush1.msra.mxu0 0.0
  %494 = vmatprep.mubr.f32.mxu0 0.0
  %495 = vmatmul.mubr.f32.gmra.mrb[0].mxu0 %v406
  %v496 = vpop.f32.mrb[0].mxu0
  %v497 = vadd.f32 %v428, %v496
  %v498 = vpop.f32.mrb[0].mxu0
  %499 = vdwg.mxu0
  %500 = vst [vmem:[%s7] sm:$0xff] %v497
  // Predicated region
  $region30: #{mlp_forward.1} parent=0 // pred_check
    _
  $region31: #{mlp_forward.1} parent=0 // pred_check_branch
    %502 = sbr.rel (0) target = $region33
  $region32: #{mlp_forward.1} parent=0 // pred_region
    _
  $region33: #{mlp_forward.1} parent=0 // pred_fallthru
    _
  // Predicated region
  $region34: #{mlp_forward.1} parent=0 // pred_check
    _
  $region35: #{mlp_forward.1} parent=0 // pred_check_branch
    %504 = sbr.rel (0) target = $region37
  $region36: #{mlp_forward.1} parent=0 // pred_region
    _
  $region37: #{mlp_forward.1} parent=0 // pred_fallthru
    _

</llo_original>
